<compile_context>
chip_gen: v7x
topology: tpu7x:2x2x1
jax: 0.10.0
libtpu: 0.0.40
codegen_flags: <defaults>
</compile_context>

<pallas_src>
import jax
import jax.numpy as jnp
from jax.experimental import pallas as pl
from jax.experimental.pallas import tpu as pltpu

C_IN, C_MID, HIDDEN, N_DOMAINS = 4, 8, 32, 2
KH = KW = 3


def _choose_b_tile(batch):
    """Images per grid step: amortize the ~0.35us/step overhead, but keep >=2
    grid steps so a v7x (2 TensorCores) is not left half idle.  Cap at 64 so
    the double-buffered bf16 patches tile stays a few MiB of VMEM."""
    if batch <= 1:
        return 1
    return max(1, min(64, batch // 2))


def _im2col_nhwc(x, kh, kw, pad):
    """x: (B, H, W, C) -> patches (B, H*W, kh*kw*C) for a stride-1 'same' conv.
    Used only by the plain-JAX reference."""
    B, H, W, C = x.shape
    xp = jnp.pad(x, ((0, 0), (pad, pad), (pad, pad), (0, 0)))
    cols = []
    for i in range(kh):
        for j in range(kw):
            cols.append(xp[:, i:i + H, j:j + W, :])
    p = jnp.concatenate(cols, axis=-1)                 # (B, H, W, kh*kw*C)
    return p.reshape(B, H * W, kh * kw * C)


def _domain_classifier_kernel_factory(hw, b_tile):
    inv_hw = 1.0 / float(hw)

    def kernel(patches_ref, wconvT_ref, bconv_ref,
               w1T_ref, b1_ref, w2T_ref, b2_ref, out_ref):
        # --- encoder conv as a lane-dense matmul --------------------------
        # (C_MID, KKC) @ (KKC, B_TILE*HW) -> (C_MID, B_TILE*HW); bf16 in, f32 acc.
        convT = jnp.dot(wconvT_ref[...], patches_ref[...],
                        preferred_element_type=jnp.float32)
        convT = jnp.maximum(convT + bconv_ref[...], 0.0)          # bias + ReLU (f32)

        # --- global average pool per image (exact f32) --------------------
        # Static, lane-aligned (C_MID, HW) slices -> cross-lane sums on the XLU
        # (free slot relative to the MXU); no reshape/relayout of the big tile.
        cols = [jnp.sum(convT[:, b * hw:(b + 1) * hw], axis=-1, keepdims=True)
                for b in range(b_tile)]
        if b_tile == 1:
            featT = cols[0] * inv_hw                              # (C_MID, 1)
        else:
            featT = jnp.concatenate(cols, axis=-1) * inv_hw       # (C_MID, B_TILE)

        # --- GradReverse: identity in the forward pass ---------------------
        # --- discriminator MLP, kept transposed (batch on lanes) -----------
        hT = jnp.dot(w1T_ref[...], featT,
                     preferred_element_type=jnp.float32) + b1_ref[...]
        hT = jnp.maximum(hT, 0.0)                                 # (HIDDEN, B_TILE)
        logitsT = jnp.dot(w2T_ref[...], hT,
                          preferred_element_type=jnp.float32) + b2_ref[...]
        out_ref[0] = logitsT                                      # (N_DOMAINS, B_TILE)

    return kernel


def domain_classifier_forward(x_nchw, params):
    """x_nchw: (B, C_IN, H, W) float32 -> domain logits (B, N_DOMAINS) float32."""
    wconv, bconv, w1, b1, w2, b2 = params
    B, C, H, W = x_nchw.shape
    HW = H * W
    KKC = KH * KW * C

    b_tile = _choose_b_tile(B)
    num_tiles = (B + b_tile - 1) // b_tile
    b_pad = num_tiles * b_tile
    if b_pad != B:
        x_nchw = jnp.pad(x_nchw, ((0, b_pad - B), (0, 0), (0, 0), (0, 0)))

    # Transposed im2col: (KKC, B_pad*HW) with batch*spatial on the minor (lane)
    # axis and kernel-taps*channels on sublanes.  Row order is (ki, kj, c),
    # matching the (KH*KW*C_IN, C_MID) conv-weight layout.  Cast to bf16 first
    # so the XLA-side glue (one transpose + 9 slices + concat) writes half the
    # bytes; values are identical to casting after im2col.
    # TODO(synk): at larger B/H/W, fold patch construction into the kernel
    # (9 shifted slices of a VMEM-resident padded tile) to avoid the 9x HBM
    # expansion of this im2col tensor; at this toy size it is only ~36 KB.
    xp = jnp.pad(x_nchw.astype(jnp.bfloat16), ((0, 0), (0, 0), (1, 1), (1, 1)))
    xpt = jnp.transpose(xp, (1, 0, 2, 3))                          # (C, B_pad, H+2, W+2)
    slabs = [xpt[:, :, i:i + H, j:j + W].reshape(C, b_pad * HW)
             for i in range(KH) for j in range(KW)]
    patchesT = jnp.concatenate(slabs, axis=0)                      # (KKC, B_pad*HW) bf16

    # bf16 operands for the dominant matmul (f32 accumulation inside the kernel).
    wconvT = jnp.transpose(wconv).astype(jnp.bfloat16)             # (C_MID, KKC)
    bconv_c = bconv.reshape(C_MID, 1).astype(jnp.float32)
    w1T = jnp.transpose(w1).astype(jnp.float32)                    # (HIDDEN, C_MID)
    b1_c = b1.reshape(HIDDEN, 1).astype(jnp.float32)
    w2T = jnp.transpose(w2).astype(jnp.float32)                    # (N_DOMAINS, HIDDEN)
    b2_c = b2.reshape(N_DOMAINS, 1).astype(jnp.float32)

    lane = b_tile * HW
    flops = (2 * b_pad * HW * KKC * C_MID
             + 2 * b_pad * (C_MID * HIDDEN + HIDDEN * N_DOMAINS))
    bytes_accessed = (patchesT.size * patchesT.dtype.itemsize
                      + wconvT.size * wconvT.dtype.itemsize
                      + (bconv_c.size + w1T.size + b1_c.size
                         + w2T.size + b2_c.size) * 4
                      + b_pad * N_DOMAINS * 4)

    kernel = _domain_classifier_kernel_factory(HW, b_tile)
    out = pl.pallas_call(
        kernel,
        out_shape=jax.ShapeDtypeStruct((num_tiles, N_DOMAINS, b_tile), jnp.float32),
        grid=(num_tiles,),
        in_specs=[
            pl.BlockSpec((KKC, lane), lambda t: (0, t)),           # patches^T tile
            pl.BlockSpec((C_MID, KKC), lambda t: (0, 0)),          # conv weight^T
            pl.BlockSpec((C_MID, 1), lambda t: (0, 0)),            # conv bias
            pl.BlockSpec((HIDDEN, C_MID), lambda t: (0, 0)),       # fc1 weight^T
            pl.BlockSpec((HIDDEN, 1), lambda t: (0, 0)),           # fc1 bias
            pl.BlockSpec((N_DOMAINS, HIDDEN), lambda t: (0, 0)),   # fc2 weight^T
            pl.BlockSpec((N_DOMAINS, 1), lambda t: (0, 0)),        # fc2 bias
        ],
        out_specs=pl.BlockSpec((1, N_DOMAINS, b_tile), lambda t: (t, 0, 0)),
        compiler_params=pltpu.CompilerParams(
            dimension_semantics=("parallel",)),
        cost_estimate=pl.CostEstimate(flops=flops, transcendentals=0,
                                      bytes_accessed=bytes_accessed),
    )(patchesT, wconvT, bconv_c, w1T, b1_c, w2T, b2_c)

    logits = jnp.transpose(out, (0, 2, 1)).reshape(b_pad, N_DOMAINS)
    return logits[:B]


def init_params(key):
    """Deterministic synthetic parameters (not a checkpoint load)."""
    ks = jax.random.split(key, 6)
    # conv weight stored as (KH*KW*C_IN, C_MID): a PyTorch Conv2d weight
    # (C_MID, C_IN, KH, KW) permuted to (KH, KW, C_IN, C_MID) and flattened,
    # matching the (ki, kj, c) patch-row ordering used above.
    wconv = jax.random.normal(ks[0], (KH * KW * C_IN, C_MID), jnp.float32) * 0.1
    bconv = jax.random.normal(ks[1], (C_MID,), jnp.float32) * 0.1
    w1 = jax.random.normal(ks[2], (C_MID, HIDDEN), jnp.float32) * 0.1
    b1 = jax.random.normal(ks[3], (HIDDEN,), jnp.float32) * 0.1
    w2 = jax.random.normal(ks[4], (HIDDEN, N_DOMAINS), jnp.float32) * 0.1
    b2 = jax.random.normal(ks[5], (N_DOMAINS,), jnp.float32) * 0.1
    return (wconv, bconv, w1, b1, w2, b2)


def reference_forward(x_nchw, params):
    """Plain-JAX reference of the same forward pass.  The conv operands are
    passed through the same bf16 quantization the kernel applies so the check
    is apples-to-apples; accumulation is f32 in both."""
    wconv, bconv, w1, b1, w2, b2 = params
    x = jnp.transpose(x_nchw, (0, 2, 3, 1))
    patches = _im2col_nhwc(x, KH, KW, pad=1)
    p = patches.astype(jnp.bfloat16).astype(jnp.float32)
    wc = wconv.astype(jnp.bfloat16).astype(jnp.float32)
    conv = jnp.maximum(jnp.einsum('bpk,kc->bpc', p, wc) + bconv, 0.0)
    feat = jnp.mean(conv, axis=1)                       # global avg pool
    h = jnp.maximum(feat @ w1 + b1, 0.0)                # GradReverse = identity fwd
    return h @ w2 + b2


if __name__ == "__main__":
    key = jax.random.PRNGKey(0)
    kx, kp = jax.random.split(key)
    # PyTorch-style NCHW input: batch=2, channels=4, spatial=16x16
    x = jax.random.normal(kx, (2, C_IN, 16, 16), jnp.float32)
    params = init_params(kp)

    out = jax.block_until_ready(domain_classifier_forward(x, params))
    ref = reference_forward(x, params)

    assert out.shape == (2, N_DOMAINS), out.shape
    # Tolerance covers bf16 conv operands + default f32 MXU precision of the
    # tiny discriminator matmuls; structure/accumulation is otherwise identical.
    assert jnp.allclose(out, ref, atol=1e-2, rtol=1e-2), jnp.max(jnp.abs(out - ref))
    print("KERNEL_OK")
</pallas_src>

<mosaic_0001>
module attributes {stable_mosaic.version = 11 : i64} {
  func.func @kernel(%arg0: i32, %arg1: memref<36x256xbf16, #tpu.memory_space<vmem>>, %arg2: memref<8x36xbf16, #tpu.memory_space<vmem>>, %arg3: memref<8x1xf32, #tpu.memory_space<vmem>>, %arg4: memref<32x8xf32, #tpu.memory_space<vmem>>, %arg5: memref<32x1xf32, #tpu.memory_space<vmem>>, %arg6: memref<2x32xf32, #tpu.memory_space<vmem>>, %arg7: memref<2x1xf32, #tpu.memory_space<vmem>>, %arg8: memref<1x2x1xf32, #tpu.memory_space<vmem>>) attributes {dimension_semantics = [#tpu.dimension_semantics<parallel>], iteration_bounds = array<i64: 2>, scalar_prefetch = 0 : i64, scratch_operands = 0 : i64, tpu.core_type = #tpu.core_type<tc>, window_params = [{transform_indices = @transform_0, window_bounds = array<i64: 36, 256>}, {pipeline_mode = #tpu.pipeline_mode<synchronous>, transform_indices = @transform_1, window_bounds = array<i64: 8, 36>}, {pipeline_mode = #tpu.pipeline_mode<synchronous>, transform_indices = @transform_2, window_bounds = array<i64: 8, 1>}, {pipeline_mode = #tpu.pipeline_mode<synchronous>, transform_indices = @transform_3, window_bounds = array<i64: 32, 8>}, {pipeline_mode = #tpu.pipeline_mode<synchronous>, transform_indices = @transform_4, window_bounds = array<i64: 32, 1>}, {pipeline_mode = #tpu.pipeline_mode<synchronous>, transform_indices = @transform_5, window_bounds = array<i64: 2, 32>}, {pipeline_mode = #tpu.pipeline_mode<synchronous>, transform_indices = @transform_6, window_bounds = array<i64: 2, 1>}, {transform_indices = @transform_7, window_bounds = array<i64: 1, 2, 1>}]} {
    %c0 = arith.constant 0 : index
    %c0_0 = arith.constant 0 : index
    %0 = vector.load %arg2[%c0, %c0_0] : memref<8x36xbf16, #tpu.memory_space<vmem>>, vector<8x36xbf16>
    %c0_1 = arith.constant 0 : index
    %c0_2 = arith.constant 0 : index
    %1 = vector.load %arg1[%c0_1, %c0_2] : memref<36x256xbf16, #tpu.memory_space<vmem>>, vector<36x256xbf16>
    %cst = arith.constant dense<0.000000e+00> : vector<8x256xf32>
    %2 = tpu.matmul %0, %1, %cst {dimension_numbers = #tpu.dot_dimension_numbers<[1], [0], [0], [1], [0, 0, 1, 1], [], []>} : vector<8x36xbf16>, vector<36x256xbf16>, vector<8x256xf32> -> vector<8x256xf32>
    %c0_3 = arith.constant 0 : index
    %c0_4 = arith.constant 0 : index
    %3 = vector.load %arg3[%c0_3, %c0_4] : memref<8x1xf32, #tpu.memory_space<vmem>>, vector<8x1xf32>
    %4 = vector.broadcast %3 : vector<8x1xf32> to vector<8x256xf32>
    %5 = arith.addf %2, %4 : vector<8x256xf32>
    %cst_5 = arith.constant 0.000000e+00 : f32
    %6 = vector.broadcast %cst_5 : f32 to vector<8x256xf32>
    %7 = arith.maximumf %5, %6 : vector<8x256xf32>
    %cst_6 = arith.constant dense<0.000000e+00> : vector<8xf32>
    %8 = vector.multi_reduction <add>, %7, %cst_6 [1] : vector<8x256xf32> to vector<8xf32>
    %9 = vector.shape_cast %8 : vector<8xf32> to vector<8x1xf32>
    %cst_7 = arith.constant 3.906250e-03 : f32
    %10 = vector.broadcast %cst_7 : f32 to vector<8x1xf32>
    %11 = arith.mulf %9, %10 : vector<8x1xf32>
    %c0_8 = arith.constant 0 : index
    %c0_9 = arith.constant 0 : index
    %12 = vector.load %arg4[%c0_8, %c0_9] : memref<32x8xf32, #tpu.memory_space<vmem>>, vector<32x8xf32>
    %cst_10 = arith.constant dense<0.000000e+00> : vector<32x1xf32>
    %13 = tpu.matmul %12, %11, %cst_10 {dimension_numbers = #tpu.dot_dimension_numbers<[1], [0], [0], [1], [0, 0, 1, 1], [], []>} : vector<32x8xf32>, vector<8x1xf32>, vector<32x1xf32> -> vector<32x1xf32>
    %c0_11 = arith.constant 0 : index
    %c0_12 = arith.constant 0 : index
    %14 = vector.load %arg5[%c0_11, %c0_12] : memref<32x1xf32, #tpu.memory_space<vmem>>, vector<32x1xf32>
    %15 = arith.addf %13, %14 : vector<32x1xf32>
    %cst_13 = arith.constant 0.000000e+00 : f32
    %16 = vector.broadcast %cst_13 : f32 to vector<32x1xf32>
    %17 = arith.maximumf %15, %16 : vector<32x1xf32>
    %c0_14 = arith.constant 0 : index
    %c0_15 = arith.constant 0 : index
    %18 = vector.load %arg6[%c0_14, %c0_15] : memref<2x32xf32, #tpu.memory_space<vmem>>, vector<2x32xf32>
    %cst_16 = arith.constant dense<0.000000e+00> : vector<2x1xf32>
    %19 = tpu.matmul %18, %17, %cst_16 {dimension_numbers = #tpu.dot_dimension_numbers<[1], [0], [0], [1], [0, 0, 1, 1], [], []>} : vector<2x32xf32>, vector<32x1xf32>, vector<2x1xf32> -> vector<2x1xf32>
    %c0_17 = arith.constant 0 : index
    %c0_18 = arith.constant 0 : index
    %20 = vector.load %arg7[%c0_17, %c0_18] : memref<2x1xf32, #tpu.memory_space<vmem>>, vector<2x1xf32>
    %21 = arith.addf %19, %20 : vector<2x1xf32>
    %c0_19 = arith.constant 0 : index
    %c0_20 = arith.constant 0 : index
    %c0_21 = arith.constant 0 : index
    %22 = vector.load %arg8[%c0_19, %c0_20, %c0_21] : memref<1x2x1xf32, #tpu.memory_space<vmem>>, vector<1x2x1xf32>
    %23 = vector.shape_cast %22 : vector<1x2x1xf32> to vector<2x1xf32>
    %24 = vector.shape_cast %21 : vector<2x1xf32> to vector<1x2x1xf32>
    tpu.vector_store %arg8[%c0_19, %c0_20, %c0_21], %24 {strides = array<i32>} : memref<1x2x1xf32, #tpu.memory_space<vmem>>, vector<1x2x1xf32>,
    return
  }
  func.func @transform_0(%arg0: i32) -> (i32, i32) {
    %c0_i32 = arith.constant 0 : i32
    %c0_i32_0 = arith.constant 0 : i32
    return %c0_i32, %arg0 : i32, i32
  }
  func.func @transform_1(%arg0: i32) -> (i32, i32) {
    %c0_i32 = arith.constant 0 : i32
    %c0_i32_0 = arith.constant 0 : i32
    %c0_i32_1 = arith.constant 0 : i32
    return %c0_i32, %c0_i32_0 : i32, i32
  }
  func.func @transform_2(%arg0: i32) -> (i32, i32) {
    %c0_i32 = arith.constant 0 : i32
    %c0_i32_0 = arith.constant 0 : i32
    %c0_i32_1 = arith.constant 0 : i32
    return %c0_i32, %c0_i32_0 : i32, i32
  }
  func.func @transform_3(%arg0: i32) -> (i32, i32) {
    %c0_i32 = arith.constant 0 : i32
    %c0_i32_0 = arith.constant 0 : i32
    %c0_i32_1 = arith.constant 0 : i32
    return %c0_i32, %c0_i32_0 : i32, i32
  }
  func.func @transform_4(%arg0: i32) -> (i32, i32) {
    %c0_i32 = arith.constant 0 : i32
    %c0_i32_0 = arith.constant 0 : i32
    %c0_i32_1 = arith.constant 0 : i32
    return %c0_i32, %c0_i32_0 : i32, i32
  }
  func.func @transform_5(%arg0: i32) -> (i32, i32) {
    %c0_i32 = arith.constant 0 : i32
    %c0_i32_0 = arith.constant 0 : i32
    %c0_i32_1 = arith.constant 0 : i32
    return %c0_i32, %c0_i32_0 : i32, i32
  }
  func.func @transform_6(%arg0: i32) -> (i32, i32) {
    %c0_i32 = arith.constant 0 : i32
    %c0_i32_0 = arith.constant 0 : i32
    %c0_i32_1 = arith.constant 0 : i32
    return %c0_i32, %c0_i32_0 : i32, i32
  }
  func.func @transform_7(%arg0: i32) -> (i32, i32, i32) {
    %c0_i32 = arith.constant 0 : i32
    %c0_i32_0 = arith.constant 0 : i32
    %c0_i32_1 = arith.constant 0 : i32
    return %arg0, %c0_i32, %c0_i32_0 : i32, i32, i32
  }
}

</mosaic_0001>

<llo_original>
// kernel: tpu_custom_call.1
$region0: #{tpu_custom_call.1}
  #allocation0 [shape = 'u32[]', space=smem, size = 0x4, offset = 0x4, fixed_abs, tag = 'smem constant byte address 0x4 - core index']
  #allocation1 [shape = 'u32[144,128]{1,0:T(1,128)}', space=vmem, size = 0x12000, scoped, tag = 'internal scratch']
  %s0 = inlined_call_operand.vmem [shape: bf16[36,512], index: 0, kind: input, shape index: {}]
  %s1 = inlined_call_operand.hbm [shape: bf16[8,36], index: 1, kind: input, shape index: {}]
  %s2 = inlined_call_operand.vmem [shape: f32[8,1], index: 2, kind: input, shape index: {}]
  %s3 = inlined_call_operand.vmem [shape: f32[32,8], index: 3, kind: input, shape index: {}]
  %s4 = inlined_call_operand.vmem [shape: f32[32,1], index: 4, kind: input, shape index: {}]
  %s5 = inlined_call_operand.vmem [shape: f32[2,32], index: 5, kind: input, shape index: {}]
  %s6 = inlined_call_operand.vmem [shape: f32[2,1], index: 6, kind: input, shape index: {}]
  %s7 = inlined_call_operand.vmem [shape: f32[2,2,1], index: 7, kind: output, shape index: {}]
  %s8 = sld [smem:[#allocation0]]
  $region103: #{tpu_custom_call.1} parent=0
    _
  %s10 = ssub.s32 1, %s8
  %s11 = scalar_select 0, %s10, %s8
  $region1: #{tpu_custom_call.1} parent=0
    #allocation2 [shape = 'u8[40960]{0}', space=vmem, size = 0xa000, scoped, tag = 'input window, operand 0']
    #allocation3 [shape = 'u8[2048]{0}', space=vmem, size = 0x800, scoped, tag = 'input window, operand 1, single buffered']
    #allocation4 [shape = 's32[2]{0}', space=sflag, size = 0x8, scoped, tag = 'scoped memory for tpu_custom_call.1']
    %12 = vsyncpa [#allocation4], 0
    loop: start=0, step=1, limit=4
    $region2: #{tpu_custom_call.1} parent=1 // loop_pre_header
      _
    $region3: #{tpu_custom_call.1} parent=1 // loop_header
      %s14 = sphi 0, %s18
      %p15 = scmp.ge.s32.totalorder %s14, 4
      %s24 = sphi 0, %s26
      %s27 = sphi 0, %s24
      %s28 = sphi 0, %s27
      %s44 = sphi 0, %s28
      %s48 = sphi 0, %s48
      %s50 = sphi 0, %s48
      %s51 = sphi 0, %s50
      %s65 = sphi 0, %s51
      %s69 = sphi 0, %s69
      %s71 = sphi 0, %s69
      %s72 = sphi 0, %s71
      %s86 = sphi 0, %s72
      %s90 = sphi 0, %s90
      %s92 = sphi 0, %s90
      %s93 = sphi 0, %s92
      %s107 = sphi 0, %s93
      %s111 = sphi 0, %s111
      %s113 = sphi 0, %s111
      %s114 = sphi 0, %s113
      %s128 = sphi 0, %s114
      %s132 = sphi 0, %s132
      %s134 = sphi 0, %s132
      %s135 = sphi 0, %s134
      %s149 = sphi 0, %s135
      %s153 = sphi 0, %s153
      %s155 = sphi 0, %s153
      %s156 = sphi 0, %s155
      %s170 = sphi 0, %s156
      %s176 = sphi 0, %s178
      %s179 = sphi 0, %s176
      %s180 = sphi 0, %s179
      %s196 = sphi 0, %s180
    $region4: #{tpu_custom_call.1} parent=1 // loop_header_branch
      %17 = sbr.rel (%p15) target = $region8
    $region5: #{tpu_custom_call.1} parent=1 // loop_body
      %s19 = ssub.s32 %s14, 1
      %s20 = ssub.s32 %s14, 2
      %s21 = sadd.s32 %s14, 1
      %s22 = ssub.s32 %s14, %s21
      %p23 = scmp.eq.s32.totalorder %s22, 0
      %s25 = sadd.s32 %s24, 1
      %s26 = scalar_select %p23, %s24, %s25
      %p29 = pneg %p23
      %p30 = scmp.eq.s32.totalorder %s14, 1
      %p31 = por %p29, %p30
      %p32 = scmp.ne.s32.totalorder %s24, %s27
      %p33 = scmp.eq.s32.totalorder %s14, 0
      %p34 = por %p32, %p33
      %p35 = scmp.ne.s32.totalorder %s24, %s27
      %p36 = scmp.eq.s32.totalorder %s19, 1
      %p37 = por %p35, %p36
      %p38 = scmp.ne.s32.totalorder %s27, %s28
      %p39 = scmp.eq.s32.totalorder %s19, 0
      %p40 = por %p38, %p39
      %p41 = scmp.ne.s32.totalorder %s27, %s28
      %p42 = scmp.eq.s32.totalorder %s20, 1
      %p43 = por %p41, %p42
      %p45 = scmp.ne.s32.totalorder %s28, %s44
      %p46 = scmp.eq.s32.totalorder %s20, 0
      %p47 = por %p45, %p46
      %s49 = sadd.s32 %s48, 1
      %p52 = scmp.eq.s32.totalorder %s14, 1
      %p53 = scmp.ne.s32.totalorder %s48, %s50
      %p54 = scmp.eq.s32.totalorder %s14, 0
      %p55 = por %p53, %p54
      %p56 = scmp.ne.s32.totalorder %s48, %s50
      %p57 = scmp.eq.s32.totalorder %s19, 1
      %p58 = por %p56, %p57
      %p59 = scmp.ne.s32.totalorder %s50, %s51
      %p60 = scmp.eq.s32.totalorder %s19, 0
      %p61 = por %p59, %p60
      %p62 = scmp.ne.s32.totalorder %s50, %s51
      %p63 = scmp.eq.s32.totalorder %s20, 1
      %p64 = por %p62, %p63
      %p66 = scmp.ne.s32.totalorder %s51, %s65
      %p67 = scmp.eq.s32.totalorder %s20, 0
      %p68 = por %p66, %p67
      %s70 = sadd.s32 %s69, 1
      %p73 = scmp.eq.s32.totalorder %s14, 1
      %p74 = scmp.ne.s32.totalorder %s69, %s71
      %p75 = scmp.eq.s32.totalorder %s14, 0
      %p76 = por %p74, %p75
      %p77 = scmp.ne.s32.totalorder %s69, %s71
      %p78 = scmp.eq.s32.totalorder %s19, 1
      %p79 = por %p77, %p78
      %p80 = scmp.ne.s32.totalorder %s71, %s72
      %p81 = scmp.eq.s32.totalorder %s19, 0
      %p82 = por %p80, %p81
      %p83 = scmp.ne.s32.totalorder %s71, %s72
      %p84 = scmp.eq.s32.totalorder %s20, 1
      %p85 = por %p83, %p84
      %p87 = scmp.ne.s32.totalorder %s72, %s86
      %p88 = scmp.eq.s32.totalorder %s20, 0
      %p89 = por %p87, %p88
      %s91 = sadd.s32 %s90, 1
      %p94 = scmp.eq.s32.totalorder %s14, 1
      %p95 = scmp.ne.s32.totalorder %s90, %s92
      %p96 = scmp.eq.s32.totalorder %s14, 0
      %p97 = por %p95, %p96
      %p98 = scmp.ne.s32.totalorder %s90, %s92
      %p99 = scmp.eq.s32.totalorder %s19, 1
      %p100 = por %p98, %p99
      %p101 = scmp.ne.s32.totalorder %s92, %s93
      %p102 = scmp.eq.s32.totalorder %s19, 0
      %p103 = por %p101, %p102
      %p104 = scmp.ne.s32.totalorder %s92, %s93
      %p105 = scmp.eq.s32.totalorder %s20, 1
      %p106 = por %p104, %p105
      %p108 = scmp.ne.s32.totalorder %s93, %s107
      %p109 = scmp.eq.s32.totalorder %s20, 0
      %p110 = por %p108, %p109
      %s112 = sadd.s32 %s111, 1
      %p115 = scmp.eq.s32.totalorder %s14, 1
      %p116 = scmp.ne.s32.totalorder %s111, %s113
      %p117 = scmp.eq.s32.totalorder %s14, 0
      %p118 = por %p116, %p117
      %p119 = scmp.ne.s32.totalorder %s111, %s113
      %p120 = scmp.eq.s32.totalorder %s19, 1
      %p121 = por %p119, %p120
      %p122 = scmp.ne.s32.totalorder %s113, %s114
      %p123 = scmp.eq.s32.totalorder %s19, 0
      %p124 = por %p122, %p123
      %p125 = scmp.ne.s32.totalorder %s113, %s114
      %p126 = scmp.eq.s32.totalorder %s20, 1
      %p127 = por %p125, %p126
      %p129 = scmp.ne.s32.totalorder %s114, %s128
      %p130 = scmp.eq.s32.totalorder %s20, 0
      %p131 = por %p129, %p130
      %s133 = sadd.s32 %s132, 1
      %p136 = scmp.eq.s32.totalorder %s14, 1
      %p137 = scmp.ne.s32.totalorder %s132, %s134
      %p138 = scmp.eq.s32.totalorder %s14, 0
      %p139 = por %p137, %p138
      %p140 = scmp.ne.s32.totalorder %s132, %s134
      %p141 = scmp.eq.s32.totalorder %s19, 1
      %p142 = por %p140, %p141
      %p143 = scmp.ne.s32.totalorder %s134, %s135
      %p144 = scmp.eq.s32.totalorder %s19, 0
      %p145 = por %p143, %p144
      %p146 = scmp.ne.s32.totalorder %s134, %s135
      %p147 = scmp.eq.s32.totalorder %s20, 1
      %p148 = por %p146, %p147
      %p150 = scmp.ne.s32.totalorder %s135, %s149
      %p151 = scmp.eq.s32.totalorder %s20, 0
      %p152 = por %p150, %p151
      %s154 = sadd.s32 %s153, 1
      %p157 = scmp.eq.s32.totalorder %s14, 1
      %p158 = scmp.ne.s32.totalorder %s153, %s155
      %p159 = scmp.eq.s32.totalorder %s14, 0
      %p160 = por %p158, %p159
      %p161 = scmp.ne.s32.totalorder %s153, %s155
      %p162 = scmp.eq.s32.totalorder %s19, 1
      %p163 = por %p161, %p162
      %p164 = scmp.ne.s32.totalorder %s155, %s156
      %p165 = scmp.eq.s32.totalorder %s19, 0
      %p166 = por %p164, %p165
      %p167 = scmp.ne.s32.totalorder %s155, %s156
      %p168 = scmp.eq.s32.totalorder %s20, 1
      %p169 = por %p167, %p168
      %p171 = scmp.ne.s32.totalorder %s156, %s170
      %p172 = scmp.eq.s32.totalorder %s20, 0
      %p173 = por %p171, %p172
      %s174 = ssub.s32 %s14, %s21
      %p175 = scmp.eq.s32.totalorder %s174, 0
      %s177 = sadd.s32 %s176, 1
      %s178 = scalar_select %p175, %s176, %s177
      %p181 = pneg %p175
      %p182 = scmp.eq.s32.totalorder %s14, 1
      %p183 = por %p181, %p182
      %p184 = scmp.ne.s32.totalorder %s176, %s179
      %p185 = scmp.eq.s32.totalorder %s14, 0
      %p186 = por %p184, %p185
      %p187 = scmp.ne.s32.totalorder %s176, %s179
      %p188 = scmp.eq.s32.totalorder %s19, 1
      %p189 = por %p187, %p188
      %p190 = scmp.ne.s32.totalorder %s179, %s180
      %p191 = scmp.eq.s32.totalorder %s19, 0
      %p192 = por %p190, %p191
      %p193 = scmp.ne.s32.totalorder %s179, %s180
      %p194 = scmp.eq.s32.totalorder %s20, 1
      %p195 = por %p193, %p194
      %p197 = scmp.ne.s32.totalorder %s180, %s196
      %p198 = scmp.eq.s32.totalorder %s20, 0
      %p199 = por %p197, %p198
      %p200 = scmp.le.s32.totalorder 1, %s14
      %p201 = scmp.lt.s32.totalorder %s14, 3
      %p202 = pnand %p200, %p201
      %p203 = pneg %p202
      // Predicated region
      $region9: #{tpu_custom_call.1} parent=5 // pred_check
        _
      $region10: #{tpu_custom_call.1} parent=5 // pred_check_branch
        %205 = sbr.rel (%p202) target = $region12
      $region11: #{tpu_custom_call.1} parent=5 // pred_region
        %s206 = ssub.s32 %s14, 1
        // Predicated region
        $region13: #{tpu_custom_call.1} parent=11 // pred_check
          %p207 = pneg %p61
        $region14: #{tpu_custom_call.1} parent=11 // pred_check_branch
          %209 = sbr.rel (%p207) target = $region16
        $region15: #{tpu_custom_call.1} parent=11 // pred_region
          %s211 = ssub.s32 64, 64
          %212 = vsyncadd [#allocation4], %s211
          %s214 = sshll.u32 [#allocation3], 4
          %s215 = int_to_ptr.vmem [resolvable:$true] %s214
          %217 = dma.hbm_to_vmem [thread:$0]  %s1, 64, %s215, [#allocation4]
        $region16: #{tpu_custom_call.1} parent=11 // pred_fallthru
          _
        // Predicated region
        $region17: #{tpu_custom_call.1} parent=11 // pred_check
          %p218 = pneg %p82
        $region18: #{tpu_custom_call.1} parent=11 // pred_check_branch
          %220 = sbr.rel (%p218) target = $region20
        $region19: #{tpu_custom_call.1} parent=11 // pred_region
          _
        $region20: #{tpu_custom_call.1} parent=11 // pred_fallthru
          _
        // Predicated region
        $region21: #{tpu_custom_call.1} parent=11 // pred_check
          %p221 = pneg %p103
        $region22: #{tpu_custom_call.1} parent=11 // pred_check_branch
          %223 = sbr.rel (%p221) target = $region24
        $region23: #{tpu_custom_call.1} parent=11 // pred_region
          _
        $region24: #{tpu_custom_call.1} parent=11 // pred_fallthru
          _
        // Predicated region
        $region25: #{tpu_custom_call.1} parent=11 // pred_check
          %p224 = pneg %p124
        $region26: #{tpu_custom_call.1} parent=11 // pred_check_branch
          %226 = sbr.rel (%p224) target = $region28
        $region27: #{tpu_custom_call.1} parent=11 // pred_region
          _
        $region28: #{tpu_custom_call.1} parent=11 // pred_fallthru
          _
        // Predicated region
        $region29: #{tpu_custom_call.1} parent=11 // pred_check
          %p227 = pneg %p145
        $region30: #{tpu_custom_call.1} parent=11 // pred_check_branch
          %229 = sbr.rel (%p227) target = $region32
        $region31: #{tpu_custom_call.1} parent=11 // pred_region
          _
        $region32: #{tpu_custom_call.1} parent=11 // pred_fallthru
          _
        // Predicated region
        $region33: #{tpu_custom_call.1} parent=11 // pred_check
          %p230 = pneg %p166
        $region34: #{tpu_custom_call.1} parent=11 // pred_check_branch
          %232 = sbr.rel (%p230) target = $region36
        $region35: #{tpu_custom_call.1} parent=11 // pred_region
          _
        $region36: #{tpu_custom_call.1} parent=11 // pred_fallthru
          _
      $region12: #{tpu_custom_call.1} parent=5 // pred_fallthru
        _
      %p233 = scmp.lt.s32.totalorder %s14, 2
      // Predicated region
      $region37: #{tpu_custom_call.1} parent=5 // pred_check
        %p234 = pneg %p233
      $region38: #{tpu_custom_call.1} parent=5 // pred_check_branch
        %236 = sbr.rel (%p234) target = $region40
      $region39: #{tpu_custom_call.1} parent=5 // pred_region
        // Predicated region
        $region41: #{tpu_custom_call.1} parent=39 // pred_check
          %p237 = pneg %p34
        $region42: #{tpu_custom_call.1} parent=39 // pred_check_branch
          %239 = sbr.rel (%p237) target = $region44
        $region43: #{tpu_custom_call.1} parent=39 // pred_region
          %s240 = sand.u32 %s24, 1
          %s241 = sand.u32 %s24, 1
          %s242 = smul.addr %s241, 40
          %s243 = scalar_lea.vmem [#allocation2], %s242
          %s244 = smul.u32 2, %s14
          %s245 = smul.addr %s244, 4
          %s246 = scalar_lea.vmem %s0, %s245
          // Predicated region
          $region45: #{tpu_custom_call.1} parent=43 // pred_check
            _
          $region46: #{tpu_custom_call.1} parent=43 // pred_check_branch
            %248 = sbr.rel (0) target = $region48
          $region47: #{tpu_custom_call.1} parent=43 // pred_region
            // Predicated region
            $region49: #{tpu_custom_call.1} parent=47 // pred_check
              _
            $region50: #{tpu_custom_call.1} parent=47 // pred_check_branch
              %250 = sbr.rel (0) target = $region52
            $region51: #{tpu_custom_call.1} parent=47 // pred_region
              // Predicated region
              $region64: #{tpu_custom_call.1} parent=51 // pred_check
                _
              $region65: #{tpu_custom_call.1} parent=51 // pred_check_branch
                %273 = sbr.rel (0) target = $region67
              $region66: #{tpu_custom_call.1} parent=51 // pred_region
                loop: start=0, step=1, limit=1
                $region68: #{tpu_custom_call.1} parent=66 // loop_pre_header
                  _
                $region69: #{tpu_custom_call.1} parent=66 // loop_header
                  %s275 = sphi 0, %s279
                  %p276 = scmp.ge.s32.totalorder %s275, 1
                  %s280 = sphi %s246, %s246
                  %s281 = sphi %s243, %s243
                $region70: #{tpu_custom_call.1} parent=66 // loop_header_branch
                  %278 = sbr.rel (%p276) target = $region74
                $region71: #{tpu_custom_call.1} parent=66 // loop_body
                  %v282 = vld [vmem:[%s280] sm:$0xff]
                  %283 = vst [vmem:[%s281] sm:$0xff] %v282
                  %v284 = vld [vmem:[%s280 + $0x10] sm:$0xff]
                  %285 = vst [vmem:[%s281 + $0x8] sm:$0xff] %v284
                  %v286 = vld [vmem:[%s280 + $0x20] sm:$0xff]
                  %287 = vst [vmem:[%s281 + $0x10] sm:$0xff] %v286
                  %v288 = vld [vmem:[%s280 + $0x30] sm:$0xff]
                  %289 = vst [vmem:[%s281 + $0x18] sm:$0xff] %v288
                  %v290 = vld [vmem:[%s280 + $0x40] sm:$0xff]
                  %291 = vst [vmem:[%s281 + $0x20] sm:$0xff] %v290
                $region72: #{tpu_custom_call.1} parent=66 // loop_footer
                  %s279 = sadd.s32 1, %s275
                $region73: #{tpu_custom_call.1} parent=66 // loop_footer_branch
                  %274 = sbr.rel target = $region69
                $region74: #{tpu_custom_call.1} parent=66 // loop_exit
                  _
              $region67: #{tpu_custom_call.1} parent=51 // pred_fallthru
                _
              // Predicated region
              $region75: #{tpu_custom_call.1} parent=51 // pred_check
                _
              $region76: #{tpu_custom_call.1} parent=51 // pred_check_branch
                %293 = sbr.rel target = $region78
              $region77: #{tpu_custom_call.1} parent=51 // pred_region
                _
              $region78: #{tpu_custom_call.1} parent=51 // pred_fallthru
                _
            $region52: #{tpu_custom_call.1} parent=47 // pred_fallthru
              _
            // Predicated region
            $region53: #{tpu_custom_call.1} parent=47 // pred_check
              _
            $region54: #{tpu_custom_call.1} parent=47 // pred_check_branch
              %252 = sbr.rel target = $region56
            $region55: #{tpu_custom_call.1} parent=47 // pred_region
              loop: start=0, step=1, limit=1
              $region57: #{tpu_custom_call.1} parent=55 // loop_pre_header
                _
              $region58: #{tpu_custom_call.1} parent=55 // loop_header
                %s255 = sphi 0, %s259
                %p256 = scmp.ge.s32.totalorder %s255, 1
                %s260 = sphi %s246, %s246
                %s261 = sphi %s243, %s243
              $region59: #{tpu_custom_call.1} parent=55 // loop_header_branch
                %258 = sbr.rel (%p256) target = $region63
              $region60: #{tpu_custom_call.1} parent=55 // loop_body
                %v262 = vld [vmem:[%s260] sm:$0xff]
                %263 = vst [vmem:[%s261] sm:$0xff] %v262
                %v264 = vld [vmem:[%s260 + $0x10] sm:$0xff]
                %265 = vst [vmem:[%s261 + $0x8] sm:$0xff] %v264
                %v266 = vld [vmem:[%s260 + $0x20] sm:$0xff]
                %267 = vst [vmem:[%s261 + $0x10] sm:$0xff] %v266
                %v268 = vld [vmem:[%s260 + $0x30] sm:$0xff]
                %269 = vst [vmem:[%s261 + $0x18] sm:$0xff] %v268
                %v270 = vld [vmem:[%s260 + $0x40] sm:$0xff]
                %271 = vst [vmem:[%s261 + $0x20] sm:$0xff] %v270
              $region61: #{tpu_custom_call.1} parent=55 // loop_footer
                %s259 = sadd.s32 1, %s255
              $region62: #{tpu_custom_call.1} parent=55 // loop_footer_branch
                %254 = sbr.rel target = $region58
              $region63: #{tpu_custom_call.1} parent=55 // loop_exit
                _
            $region56: #{tpu_custom_call.1} parent=47 // pred_fallthru
              _
          $region48: #{tpu_custom_call.1} parent=43 // pred_fallthru
            _
          %294 = vnop
        $region44: #{tpu_custom_call.1} parent=39 // pred_fallthru
          _
      $region40: #{tpu_custom_call.1} parent=5 // pred_fallthru
        _
      %p295 = scmp.le.s32.totalorder 1, %s14
      %p296 = scmp.lt.s32.totalorder %s14, 3
      %p297 = pnand %p295, %p296
      %p298 = pneg %p297
      // Predicated region
      $region79: #{tpu_custom_call.1} parent=5 // pred_check
        _
      $region80: #{tpu_custom_call.1} parent=5 // pred_check_branch
        %300 = sbr.rel (%p297) target = $region82
      $region81: #{tpu_custom_call.1} parent=5 // pred_region
        %s301 = ssub.s32 %s14, 1
        %s302 = sand.u32 %s27, 1
        %s303 = sand.u32 %s27, 1
        %s304 = smul.addr %s303, 40
        %s305 = scalar_lea.vmem [#allocation2], %s304
        // Predicated region
        $region83: #{tpu_custom_call.1} parent=81 // pred_check
          %p306 = pneg %p40
        $region84: #{tpu_custom_call.1} parent=81 // pred_check_branch
          %308 = sbr.rel (%p306) target = $region86
        $region85: #{tpu_custom_call.1} parent=81 // pred_region
          _
        $region86: #{tpu_custom_call.1} parent=81 // pred_fallthru
          _
        // Predicated region
        $region87: #{tpu_custom_call.1} parent=81 // pred_check
          %p309 = pneg %p61
        $region88: #{tpu_custom_call.1} parent=81 // pred_check_branch
          %311 = sbr.rel (%p309) target = $region90
        $region89: #{tpu_custom_call.1} parent=81 // pred_region
          %312 = dma.done [#allocation4], 64
        $region90: #{tpu_custom_call.1} parent=81 // pred_fallthru
          _
        %s313 = sand.u32 %s27, 1
        %s314 = sand.u32 %s27, 1
        %s315 = smul.addr %s314, 40
        %s316 = scalar_lea.vmem [#allocation2], %s315
        %p317 = pneg %p40
        %p318 = pneg %p37
        %p319 = pneg %p61
        %p320 = pneg %p58
        %p321 = pneg %p82
        %p322 = pneg %p79
        %p323 = pneg %p103
        %p324 = pneg %p100
        %p325 = pneg %p124
        %p326 = pneg %p121
        %p327 = pneg %p145
        %p328 = pneg %p142
        %p329 = pneg %p166
        %p330 = pneg %p163
        %p331 = pneg %p192
        %p332 = pneg %p189
        %p333 = scmp.lt.s32.totalorder %s19, 1
        %s334 = scalar_select %p333, %s19, 1
        %s335 = smul.addr %s334, 2
        %s336 = scalar_lea.vmem %s7, %s335
        %s337 = smul.u32 2, %s19
        %p338 = scmp.lt.s32.totalorder %s19, 1
        %s339 = scalar_select %p338, %s19, 1
        %s340 = smul.addr %s339, 2
        %s341 = scalar_lea.vmem %s7, %s340
        %v343 = vld [vmem:[#allocation3] sm:$0xf]
        %v344 = vld [vmem:[%s305] sm:$0xff]
        %v345 = vld [vmem:[%s305 + $0x8] sm:$0xff]
        %v346 = vld [vmem:[%s305 + $0x10] sm:$0xff]
        %v347 = vld [vmem:[%s305 + $0x18] sm:$0xff]
        %v348 = vld [vmem:[%s305 + $0x20] sm:$0x33]
        %v349 = vld [vmem:[%s2] sm:$0xff]
        %351 = vset.pattern.permute.xlu0 0
        %352 = vperm.xlu0 %351, %v349
        %v353 = vpop.permute.xlu0 %352
        %v360 = vunpack.c.l.b16 %v344
        %v361 = vunpack.c.h.b16 %v344
        %v362 = vunpack.c.l.b16 %v345
        %v363 = vunpack.c.h.b16 %v345
        %v364 = vunpack.c.l.b16 %v346
        %v365 = vunpack.c.h.b16 %v346
        %v366 = vunpack.c.l.b16 %v347
        %v367 = vunpack.c.h.b16 %v347
        %v368 = vunpack.c.l.b16 %v348
        %v369 = vunpack.c.h.b16 %v348
        %v370 = vpack.c.b16 %v362, %v360
        %v371 = vpack.c.b16 %v363, %v361
        %v372 = vpack.c.b16 %v366, %v364
        %v373 = vpack.c.b16 %v367, %v365
        %v374 = vpack.c.b16 %v368, %v368
        %v375 = vpack.c.b16 %v369, %v369
        %vm380 = vcmask 293888
        %v382 = vsel %vm380, %v343, 0
        %vm384 = vcmask 1041408
        %v386 = vsel %vm384, %v374, 0
        %v389 = vsel %vm384, %v375, 0
        %391 = vmatprep.subr.bf16.mxu0 %v371
        %392 = vmatpush1.bf16.msra.mxu0 %v370
        %393 = vmatprep.subr.bf16.mxu0 %v373
        %394 = vmatpush1.bf16.msra.mxu0 %v372
        %395 = vmatprep.subr.bf16.mxu0 %v389
        %396 = vmatpush1.bf16.msra.mxu0 %v386
        %397 = vmatprep.subr.bf16.mxu0 0
        %398 = vmatpush1.bf16.msra.mxu0 0
        %399 = vmatprep.subr.bf16.mxu0 0
        %400 = vmatpush1.bf16.msra.mxu0 0
        %401 = vmatprep.subr.bf16.mxu0 0
        %402 = vmatpush1.bf16.msra.mxu0 0
        %403 = vmatprep.subr.bf16.mxu0 0
        %404 = vmatpush1.bf16.msra.mxu0 0
        %405 = vmatprep.subr.bf16.mxu0 0
        %406 = vmatpush1.bf16.msra.mxu0 0
        %407 = vmatprep.subr.bf16.mxu0 0
        %408 = vmatpush1.bf16.msra.mxu0 0
        %409 = vmatprep.subr.bf16.mxu0 0
        %410 = vmatpush1.bf16.msra.mxu0 0
        %411 = vmatprep.subr.bf16.mxu0 0
        %412 = vmatpush1.bf16.msra.mxu0 0
        %413 = vmatprep.subr.bf16.mxu0 0
        %414 = vmatpush1.bf16.msra.mxu0 0
        %415 = vmatprep.subr.bf16.mxu0 0
        %416 = vmatpush1.bf16.msra.mxu0 0
        %417 = vmatprep.subr.bf16.mxu0 0
        %418 = vmatpush1.bf16.msra.mxu0 0
        %419 = vmatprep.subr.bf16.mxu0 0
        %420 = vmatpush1.bf16.msra.mxu0 0
        %421 = vmatprep.subr.bf16.mxu0 0
        %422 = vmatpush1.bf16.msra.mxu0 0
        %423 = vmatprep.mubr.bf16.mxu0 0
        %424 = vmatmul.mubr.bf16.gmra.mrb[0].mxu0 %v382
        %v425 = vpop.f32.mrb[0].mxu0
        %v426 = vadd.f32 %v353, %v425
        %v427 = vpop.f32.mrb[0].mxu0
        %v428 = vadd.f32 %v353, %v427
        %v429 = vpop.f32.mrb[0].mxu0
        %v430 = vpop.f32.mrb[0].mxu0
        %431 = vdwg.mxu0
        %v432 = vmax.f32 %v426, 0.0
        %v433 = vmax.f32 %v428, 0.0
        %v434 = vadd.f32 %v432, %v433
        %435 = vadd.xlane.f32.xlu0 %v434
        %v436 = vpop.xlane.xlu0 %435
        %v437 = vmul.f32 %v436, 0.00390625
        %v438 = vld [vmem:[%s3] sm:$0xff]
        %v439 = vld [vmem:[%s3 + $0x8] sm:$0xff]
        %v440 = vld [vmem:[%s3 + $0x10] sm:$0xff]
        %v441 = vld [vmem:[%s3 + $0x18] sm:$0xff]
        %v442 = vld [vmem:[%s4] sm:$0xff]
        %v443 = vld [vmem:[%s4 + $0x8] sm:$0xff]
        %v444 = vld [vmem:[%s4 + $0x10] sm:$0xff]
        %v445 = vld [vmem:[%s4 + $0x18] sm:$0xff]
        %vm446 = vcmask 64512
        %v448 = vsel %vm446, %v438, 0
        %v451 = vsel %vm446, %v439, 0
        %v454 = vsel %vm446, %v440, 0
        %v457 = vsel %vm446, %v441, 0
        %459 = vmatprep.subr.mxu0 0.0
        %460 = vmatpush1.msra.mxu0 %v437
        %461 = vmatprep.subr.mxu0 0.0
        %462 = vmatpush1.msra.mxu0 0.0
        %463 = vmatprep.subr.mxu0 0.0
        %464 = vmatpush1.msra.mxu0 0.0
        %465 = vmatprep.subr.mxu0 0.0
        %466 = vmatpush1.msra.mxu0 0.0
        %467 = vmatprep.subr.mxu0 0.0
        %468 = vmatpush1.msra.mxu0 0.0
        %469 = vmatprep.subr.mxu0 0.0
        %470 = vmatpush1.msra.mxu0 0.0
        %471 = vmatprep.subr.mxu0 0.0
        %472 = vmatpush1.msra.mxu0 0.0
        %473 = vmatprep.subr.mxu0 0.0
        %474 = vmatpush1.msra.mxu0 0.0
        %475 = vmatprep.subr.mxu0 0.0
        %476 = vmatpush1.msra.mxu0 0.0
        %477 = vmatprep.subr.mxu0 0.0
        %478 = vmatpush1.msra.mxu0 0.0
        %479 = vmatprep.subr.mxu0 0.0
        %480 = vmatpush1.msra.mxu0 0.0
        %481 = vmatprep.subr.mxu0 0.0
        %482 = vmatpush1.msra.mxu0 0.0
        %483 = vmatprep.subr.mxu0 0.0
        %484 = vmatpush1.msra.mxu0 0.0
        %485 = vmatprep.subr.mxu0 0.0
        %486 = vmatpush1.msra.mxu0 0.0
        %487 = vmatprep.subr.mxu0 0.0
        %488 = vmatpush1.msra.mxu0 0.0
        %489 = vmatprep.subr.mxu0 0.0
        %490 = vmatpush1.msra.mxu0 0.0
        %491 = vmatprep.subr.mxu0 0.0
        %492 = vmatpush1.msra.mxu0 0.0
        %493 = vmatprep.subr.mxu0 0.0
        %494 = vmatpush1.msra.mxu0 0.0
        %495 = vmatprep.subr.mxu0 0.0
        %496 = vmatpush1.msra.mxu0 0.0
        %497 = vmatprep.subr.mxu0 0.0
        %498 = vmatpush1.msra.mxu0 0.0
        %499 = vmatprep.subr.mxu0 0.0
        %500 = vmatpush1.msra.mxu0 0.0
        %501 = vmatprep.subr.mxu0 0.0
        %502 = vmatpush1.msra.mxu0 0.0
        %503 = vmatprep.subr.mxu0 0.0
        %504 = vmatpush1.msra.mxu0 0.0
        %505 = vmatprep.subr.mxu0 0.0
        %506 = vmatpush1.msra.mxu0 0.0
        %507 = vmatprep.subr.mxu0 0.0
        %508 = vmatpush1.msra.mxu0 0.0
        %509 = vmatprep.subr.mxu0 0.0
        %510 = vmatpush1.msra.mxu0 0.0
        %511 = vmatprep.subr.mxu0 0.0
        %512 = vmatpush1.msra.mxu0 0.0
        %513 = vmatprep.subr.mxu0 0.0
        %514 = vmatpush1.msra.mxu0 0.0
        %515 = vmatprep.subr.mxu0 0.0
        %516 = vmatpush1.msra.mxu0 0.0
        %517 = vmatprep.subr.mxu0 0.0
        %518 = vmatpush1.msra.mxu0 0.0
        %519 = vmatprep.subr.mxu0 0.0
        %520 = vmatpush1.msra.mxu0 0.0
        %521 = vmatprep.subr.mxu0 0.0
        %522 = vmatpush1.msra.mxu0 0.0
        %523 = vmatprep.mubr.f32.mxu0 0.0
        %524 = vmatmul.mubr.f32.gmra.mrb[0].mxu0 %v448
        %v525 = vpop.f32.mrb[0].mxu0
        %v526 = vadd.f32 %v442, %v525
        %v527 = vpop.f32.mrb[0].mxu0
        %528 = vmatprep.mubr.f32.mxu0 0.0
        %529 = vmatmul.mubr.f32.gmra.mrb[0].mxu0 %v451
        %v530 = vpop.f32.mrb[0].mxu0
        %v531 = vadd.f32 %v443, %v530
        %v532 = vpop.f32.mrb[0].mxu0
        %533 = vmatprep.mubr.f32.mxu0 0.0
        %534 = vmatmul.mubr.f32.gmra.mrb[0].mxu0 %v454
        %v535 = vpop.f32.mrb[0].mxu0
        %v536 = vadd.f32 %v444, %v535
        %v537 = vpop.f32.mrb[0].mxu0
        %538 = vmatprep.mubr.f32.mxu0 0.0
        %539 = vmatmul.mubr.f32.gmra.mrb[0].mxu0 %v457
        %v540 = vpop.f32.mrb[0].mxu0
        %v541 = vadd.f32 %v445, %v540
        %v542 = vpop.f32.mrb[0].mxu0
        %543 = vdwg.mxu0
        %v544 = vmax.f32 %v526, 0.0
        %v545 = vmax.f32 %v531, 0.0
        %v546 = vmax.f32 %v536, 0.0
        %v547 = vmax.f32 %v541, 0.0
        %v548 = vld [vmem:[%s5] sm:$0x3]
        %v549 = vld [vmem:[%s6] sm:$0x3]
        %vm550 = vcmask 261120
        %v552 = vsel %vm550, %v548, 0
        %554 = vmatprep.subr.mxu0 0.0
        %555 = vmatpush1.msra.mxu0 %v544
        %556 = vmatprep.subr.mxu0 0.0
        %557 = vmatpush1.msra.mxu0 %v545
        %558 = vmatprep.subr.mxu0 0.0
        %559 = vmatpush1.msra.mxu0 %v546
        %560 = vmatprep.subr.mxu0 0.0
        %561 = vmatpush1.msra.mxu0 %v547
        %562 = vmatprep.subr.mxu0 0.0
        %563 = vmatpush1.msra.mxu0 0.0
        %564 = vmatprep.subr.mxu0 0.0
        %565 = vmatpush1.msra.mxu0 0.0
        %566 = vmatprep.subr.mxu0 0.0
        %567 = vmatpush1.msra.mxu0 0.0
        %568 = vmatprep.subr.mxu0 0.0
        %569 = vmatpush1.msra.mxu0 0.0
        %570 = vmatprep.subr.mxu0 0.0
        %571 = vmatpush1.msra.mxu0 0.0
        %572 = vmatprep.subr.mxu0 0.0
        %573 = vmatpush1.msra.mxu0 0.0
        %574 = vmatprep.subr.mxu0 0.0
        %575 = vmatpush1.msra.mxu0 0.0
        %576 = vmatprep.subr.mxu0 0.0
        %577 = vmatpush1.msra.mxu0 0.0
        %578 = vmatprep.subr.mxu0 0.0
        %579 = vmatpush1.msra.mxu0 0.0
        %580 = vmatprep.subr.mxu0 0.0
        %581 = vmatpush1.msra.mxu0 0.0
        %582 = vmatprep.subr.mxu0 0.0
        %583 = vmatpush1.msra.mxu0 0.0
        %584 = vmatprep.subr.mxu0 0.0
        %585 = vmatpush1.msra.mxu0 0.0
        %586 = vmatprep.subr.mxu0 0.0
        %587 = vmatpush1.msra.mxu0 0.0
        %588 = vmatprep.subr.mxu0 0.0
        %589 = vmatpush1.msra.mxu0 0.0
        %590 = vmatprep.subr.mxu0 0.0
        %591 = vmatpush1.msra.mxu0 0.0
        %592 = vmatprep.subr.mxu0 0.0
        %593 = vmatpush1.msra.mxu0 0.0
        %594 = vmatprep.subr.mxu0 0.0
        %595 = vmatpush1.msra.mxu0 0.0
        %596 = vmatprep.subr.mxu0 0.0
        %597 = vmatpush1.msra.mxu0 0.0
        %598 = vmatprep.subr.mxu0 0.0
        %599 = vmatpush1.msra.mxu0 0.0
        %600 = vmatprep.subr.mxu0 0.0
        %601 = vmatpush1.msra.mxu0 0.0
        %602 = vmatprep.subr.mxu0 0.0
        %603 = vmatpush1.msra.mxu0 0.0
        %604 = vmatprep.subr.mxu0 0.0
        %605 = vmatpush1.msra.mxu0 0.0
        %606 = vmatprep.subr.mxu0 0.0
        %607 = vmatpush1.msra.mxu0 0.0
        %608 = vmatprep.subr.mxu0 0.0
        %609 = vmatpush1.msra.mxu0 0.0
        %610 = vmatprep.subr.mxu0 0.0
        %611 = vmatpush1.msra.mxu0 0.0
        %612 = vmatprep.subr.mxu0 0.0
        %613 = vmatpush1.msra.mxu0 0.0
        %614 = vmatprep.subr.mxu0 0.0
        %615 = vmatpush1.msra.mxu0 0.0
        %616 = vmatprep.subr.mxu0 0.0
        %617 = vmatpush1.msra.mxu0 0.0
        %618 = vmatprep.mubr.f32.mxu0 0.0
        %619 = vmatmul.mubr.f32.gmra.mrb[0].mxu0 %v552
        %v620 = vpop.f32.mrb[0].mxu0
        %v621 = vadd.f32 %v549, %v620
        %v622 = vpop.f32.mrb[0].mxu0
        %623 = vdwg.mxu0
        %vm624 = vcmask 1024
        %625 = vst.msk [vmem:[%s341] sm:$0x3] %vm624, %v621
        %p626 = scmp.lt.s32.totalorder %s19, 1
        %s627 = scalar_select %p626, %s19, 1
        %s628 = smul.addr %s627, 2
        %s629 = scalar_lea.vmem %s7, %s628
        // Predicated region
        $region91: #{tpu_custom_call.1} parent=81 // pred_check
          %p630 = pneg %p189
        $region92: #{tpu_custom_call.1} parent=81 // pred_check_branch
          %632 = sbr.rel (%p630) target = $region94
        $region93: #{tpu_custom_call.1} parent=81 // pred_region
          _
        $region94: #{tpu_custom_call.1} parent=81 // pred_fallthru
          _
      $region82: #{tpu_custom_call.1} parent=5 // pred_fallthru
        _
      %p633 = scmp.le.s32.totalorder 2, %s14
      // Predicated region
      $region95: #{tpu_custom_call.1} parent=5 // pred_check
        %p634 = pneg %p633
      $region96: #{tpu_custom_call.1} parent=5 // pred_check_branch
        %636 = sbr.rel (%p634) target = $region98
      $region97: #{tpu_custom_call.1} parent=5 // pred_region
        %s637 = ssub.s32 %s14, 2
        // Predicated region
        $region99: #{tpu_custom_call.1} parent=97 // pred_check
          %p638 = pneg %p195
        $region100: #{tpu_custom_call.1} parent=97 // pred_check_branch
          %640 = sbr.rel (%p638) target = $region102
        $region101: #{tpu_custom_call.1} parent=97 // pred_region
          %p641 = scmp.lt.s32.totalorder %s20, 1
          %s642 = scalar_select %p641, %s20, 1
          %s643 = smul.addr %s642, 2
          %s644 = scalar_lea.vmem %s7, %s643
        $region102: #{tpu_custom_call.1} parent=97 // pred_fallthru
          _
      $region98: #{tpu_custom_call.1} parent=5 // pred_fallthru
        _
    $region6: #{tpu_custom_call.1} parent=1 // loop_footer
      %s18 = sadd.s32 1, %s14
    $region7: #{tpu_custom_call.1} parent=1 // loop_footer_branch
      %13 = sbr.rel target = $region3
    $region8: #{tpu_custom_call.1} parent=1 // loop_exit
      _
    %645 = vsyncpa [#allocation4], 1
    %s646 = scalar_lea.sflag [#allocation4], 1
    %647 = vsyncpa %s646, 1

</llo_original>
